<compile_context>
chip_gen: v7x
topology: tpu7x:2x2x1
jax: 0.10.0
libtpu: 0.0.40
codegen_flags: <defaults>
</compile_context>

<pallas_src>
import functools

import jax
import jax.numpy as jnp
from jax.experimental import pallas as pl
from jax.experimental.pallas import tpu as pltpu

# --- deterministic "module parameters" (nn.Module.__init__ args) -------------
GAMMA = 2.0
ALPHA = 0.25
SIGMA = 1.0
FPN_STRIDES = (8,)
C_COEFFS = (1.0, 1.0, 1.0, 1.0, 1.0)
EPS = 1e-6

LANES = 128
ROW_UNIT = 16              # covers f32 (8,128) and bf16 (16,128) tiling + reshape(-1,8,128)
MAX_TILE_ROWS_1TC = 4096   # 4096x128 f32 x 2 inputs x 2 bufs = 8 MiB  (fits v5e 16 MiB scoped)
MAX_TILE_ROWS_2TC = 8192   # 8192x128 f32 x 2 inputs x 2 bufs = 16 MiB (fits v7x 32 MiB scoped)


def _round_up(a, b):
    return ((a + b - 1) // b) * b


def _hw_config():
    """(num tensorcores to split over, max tile rows) from the device kind."""
    try:
        kind = jax.devices()[0].device_kind.lower()
    except Exception:
        return 1, MAX_TILE_ROWS_1TC
    if "v7" in kind or "7x" in kind:      # 2 TensorCores per chip
        return 2, MAX_TILE_ROWS_2TC
    return 1, MAX_TILE_ROWS_1TC           # v5e / v6e: single TC


def _focal_sum_kernel(x_ref, q_ref, neg_ref, pos_ref, *,
                      gamma, alpha, eps, tile_rows, full_rows, tail_lanes,
                      steps_per_core):
    c = pl.program_id(0)          # core-split axis ("parallel")
    i = pl.program_id(1)          # reduction axis ("arbitrary")

    # Outputs are resident across the reduction axis: init on the first step.
    @pl.when(i == 0)
    def _():
        neg_ref[...] = jnp.zeros_like(neg_ref)
        pos_ref[...] = jnp.zeros_like(pos_ref)

    x = x_ref[...].astype(jnp.float32)
    is_neg = q_ref[...] <= eps            # compare in native dtype (no upcast)

    # Numerically stable, EUP-light math (2 heavy transcendentals + approx rcp):
    #   e = exp(-|x|)
    #   softplus(x)  = max(x,0) + log1p(e) = -log(1-p)
    #   softplus(-x) = softplus(x) - x     = -log(p)
    #   sigmoid(x)   = where(x>=0, 1, e) / (1 + e)
    e = jnp.exp(-jnp.abs(x))
    sp_pos = jnp.maximum(x, 0.0) + jnp.log1p(e)    # -log(1 - p)
    sp_neg = sp_pos - x                            # -log(p)
    inv = pl.reciprocal(1.0 + e, approx=True)
    p = jnp.where(x >= 0.0, 1.0, e) * inv

    if gamma == 2.0:
        p_pow = p * p
        omp = 1.0 - p
        omp_pow = omp * omp
    else:
        p_pow = p ** gamma
        omp_pow = (1.0 - p) ** gamma

    # One compare drives both selects (keep these as selects: they also guard
    # NaN/Inf coming from garbage data in partial/idle edge tiles).
    neg_sel = jnp.where(is_neg, (1.0 - alpha) * p_pow * sp_pos, 0.0)
    pos_sel = jnp.where(is_neg, 0.0, alpha * omp_pow * sp_neg)

    def accumulate(neg_vals, pos_vals):
        # Pure-VPU partial reduction: fold vregs along the leading axis into (8,128).
        neg_ref[...] += jnp.sum(neg_vals.reshape(-1, 8, LANES), axis=0).reshape(1, 8, LANES)
        pos_ref[...] += jnp.sum(pos_vals.reshape(-1, 8, LANES), axis=0).reshape(1, 8, LANES)

    blk = c * steps_per_core + i                      # un-clamped logical block id
    full = (blk + 1) * tile_rows <= full_rows         # whole tile strictly in bounds?

    @pl.when(full)
    def _():                                          # fast path: no bounds mask at all
        accumulate(neg_sel, pos_sel)

    @pl.when(jnp.logical_not(full))
    def _():                                          # at most one partial / idle tile
        rem_rows = full_rows - blk * tile_rows        # may be <= 0 for clamped idle steps
        row_ids = jax.lax.broadcasted_iota(jnp.int32, (tile_rows, LANES), 0)
        if tail_lanes == 0:
            in_b = row_ids < rem_rows
        else:
            lane_ids = jax.lax.broadcasted_iota(jnp.int32, (tile_rows, LANES), 1)
            in_b = jnp.logical_or(
                row_ids < rem_rows,
                jnp.logical_and(row_ids == rem_rows, lane_ids < tail_lanes))
        accumulate(jnp.where(in_b, neg_sel, 0.0),
                   jnp.where(in_b, pos_sel, 0.0))


def fix_sigmoid_focal_loss(cls_logits, gau_logits, targets, valid=None,
                           gamma=GAMMA, alpha=ALPHA, eps=EPS):
    """Returns (neg_loss_sum, pos_loss_sum, 0.0, 0.0) like the PyTorch module."""
    # TODO(synk): the IoU/L1 (FixedIOULoss) branch (fed by gau_logits/valid) is not
    # ported as a kernel — the reference multiplies its result by 0 on return, so we
    # emit exact zeros.
    del gau_logits, valid

    x = cls_logits.reshape(-1)          # keep native dtype; upcast inside the kernel
    q = targets.reshape(-1)
    total = int(x.shape[0])
    if total == 0:
        z = jnp.float32(0.0)
        return z, z, z, z

    # Lane alignment only: pad at most 127 elements.  Ragged row blocks are
    # handled by Pallas partial edge blocks + the in-kernel mask (no round-up
    # to the tile size, so lane-aligned inputs never pay a pad copy).
    if total % LANES:
        pad = LANES - total % LANES
        x = jnp.pad(x, (0, pad))
        q = jnp.pad(q, (0, pad))
    rows = x.shape[0] // LANES
    x = x.reshape(rows, LANES)
    q = q.reshape(rows, LANES)

    ncores_hw, max_tile_rows = _hw_config()
    tile_rows = min(max_tile_rows, _round_up(pl.cdiv(rows, ncores_hw), ROW_UNIT))
    if rows < tile_rows:
        # Tiny inputs only (< one tile): pad a few rows so block_shape <= array.
        x = jnp.pad(x, ((0, tile_rows - rows), (0, 0)))
        q = jnp.pad(q, ((0, tile_rows - rows), (0, 0)))
        rows = tile_rows

    nblocks = pl.cdiv(rows, tile_rows)
    ncores = ncores_hw if nblocks > 1 else 1   # no core split (and no idle dup tile) for 1 block
    steps_per_core = pl.cdiv(nblocks, ncores)

    full_rows = total // LANES                 # number of fully-valid 128-lane rows
    tail_lanes = total % LANES                 # valid lanes in the (optional) tail row

    def in_map(c, i):
        # Clamp so an idle trailing step never issues an out-of-bounds DMA; its
        # contribution is zeroed by the in-kernel bounds mask.
        return (jnp.minimum(c * steps_per_core + i, nblocks - 1), 0)

    kern = functools.partial(
        _focal_sum_kernel, gamma=gamma, alpha=alpha, eps=eps,
        tile_rows=tile_rows, full_rows=full_rows, tail_lanes=tail_lanes,
        steps_per_core=steps_per_core)

    neg_part, pos_part = pl.pallas_call(
        kern,
        out_shape=(jax.ShapeDtypeStruct((ncores, 8, LANES), jnp.float32),
                   jax.ShapeDtypeStruct((ncores, 8, LANES), jnp.float32)),
        grid=(ncores, steps_per_core),
        in_specs=[pl.BlockSpec((tile_rows, LANES), in_map),
                  pl.BlockSpec((tile_rows, LANES), in_map)],
        out_specs=(pl.BlockSpec((1, 8, LANES), lambda c, i: (c, 0, 0)),
                   pl.BlockSpec((1, 8, LANES), lambda c, i: (c, 0, 0))),
        compiler_params=pltpu.CompilerParams(
            dimension_semantics=("parallel", "arbitrary")),
    )(x, q)

    zero = jnp.float32(0.0)
    return jnp.sum(neg_part), jnp.sum(pos_part), zero, zero


def _reference(cls_logits, targets, gamma=GAMMA, alpha=ALPHA, eps=EPS):
    # Literal translation of the PyTorch forward for the observable terms.
    p = jax.nn.sigmoid(cls_logits.astype(jnp.float32))
    q = targets.astype(jnp.float32)
    neg = (q <= eps).astype(jnp.float32) * (1.0 - alpha) * (-(p ** gamma) * jnp.log(1.0 - p))
    pos = (q > eps).astype(jnp.float32) * alpha * (-((1.0 - p) ** gamma) * jnp.log(p))
    return jnp.sum(neg), jnp.sum(pos)


def _check(cls_logits, targets, rtol=5e-3, atol=1e-2):
    neg, pos, iou0, l10 = fix_sigmoid_focal_loss(cls_logits, cls_logits, targets,
                                                 jnp.zeros_like(targets))
    jax.block_until_ready((neg, pos, iou0, l10))
    ref_neg, ref_pos = _reference(cls_logits, targets)
    assert jnp.allclose(neg, ref_neg, rtol=rtol, atol=atol), (neg, ref_neg)
    assert jnp.allclose(pos, ref_pos, rtol=rtol, atol=atol), (pos, ref_pos)
    assert float(iou0) == 0.0 and float(l10) == 0.0


if __name__ == "__main__":
    key = jax.random.PRNGKey(0)
    k1, k2, k3, k4, k5, k6 = jax.random.split(key, 6)

    # Main case: (B, H, W, C) channels-last logits, as documented by the module.
    B, H, W, C = 2, 16, 16, 4
    cls_logits = jax.random.normal(k1, (B, H, W, C), jnp.float32)
    u = jax.random.uniform(k2, (B, H, W, C), jnp.float32)
    targets = jnp.where(u > 0.7, u, 0.0)          # mix of positives (>eps) and negatives
    _check(cls_logits, targets)

    # Ragged case: lane-pad + tail-lane mask + sub-tile row pad path.
    cl2 = jax.random.normal(k3, (1, 5, 7, 3), jnp.float32)
    u2 = jax.random.uniform(k4, (1, 5, 7, 3), jnp.float32)
    _check(cl2, jnp.where(u2 > 0.6, u2, 0.0))

    # Multi-block case (lane-aligned, not tile-aligned): fast + slow (partial
    # edge block) paths, no wrapper-side pad copy.
    cl3 = jax.random.normal(k5, (2, 96, 96, 36), jnp.float32)
    u3 = jax.random.uniform(k6, (2, 96, 96, 36), jnp.float32)
    _check(cl3, jnp.where(u3 > 0.8, u3, 0.0))

    print("KERNEL_OK")
</pallas_src>

<mosaic_0001>
module attributes {stable_mosaic.version = 11 : i64} {
  func.func @_focal_sum_kernel(%arg0: i32, %arg1: i32, %arg2: memref<16x128xf32, #tpu.memory_space<vmem>>, %arg3: memref<16x128xf32, #tpu.memory_space<vmem>>, %arg4: memref<1x8x128xf32, #tpu.memory_space<vmem>>, %arg5: memref<1x8x128xf32, #tpu.memory_space<vmem>>) attributes {dimension_semantics = [#tpu.dimension_semantics<parallel>, #tpu.dimension_semantics<arbitrary>], iteration_bounds = array<i64: 1, 1>, scalar_prefetch = 0 : i64, scratch_operands = 0 : i64, tpu.core_type = #tpu.core_type<tc>, window_params = [{transform_indices = @transform_0, window_bounds = array<i64: 16, 128>}, {transform_indices = @transform_1, window_bounds = array<i64: 16, 128>}, {transform_indices = @transform_2, window_bounds = array<i64: 1, 8, 128>}, {transform_indices = @transform_3, window_bounds = array<i64: 1, 8, 128>}]} {
    %c0_i32 = arith.constant 0 : i32
    %0 = arith.cmpi eq, %arg1, %c0_i32 : i32
    %1 = arith.extui %0 : i1 to i32
    %c0_i32_0 = arith.constant 0 : i32
    %2 = arith.cmpi ne, %1, %c0_i32_0 : i32
    scf.if %2 {
      %cst_18 = arith.constant 0.000000e+00 : f32
      %48 = vector.broadcast %cst_18 : f32 to vector<1x8x128xf32>
      %c0_19 = arith.constant 0 : index
      %c0_20 = arith.constant 0 : index
      %c0_21 = arith.constant 0 : index
      %49 = vector.load %arg4[%c0_19, %c0_20, %c0_21] : memref<1x8x128xf32, #tpu.memory_space<vmem>>, vector<1x8x128xf32>
      tpu.vector_store %arg4[%c0_19, %c0_20, %c0_21], %48 {strides = array<i32>} : memref<1x8x128xf32, #tpu.memory_space<vmem>>, vector<1x8x128xf32>,
      %cst_22 = arith.constant 0.000000e+00 : f32
      %50 = vector.broadcast %cst_22 : f32 to vector<1x8x128xf32>
      %c0_23 = arith.constant 0 : index
      %c0_24 = arith.constant 0 : index
      %c0_25 = arith.constant 0 : index
      %51 = vector.load %arg5[%c0_23, %c0_24, %c0_25] : memref<1x8x128xf32, #tpu.memory_space<vmem>>, vector<1x8x128xf32>
      tpu.vector_store %arg5[%c0_23, %c0_24, %c0_25], %50 {strides = array<i32>} : memref<1x8x128xf32, #tpu.memory_space<vmem>>, vector<1x8x128xf32>,
    } else {
    }
    %c0 = arith.constant 0 : index
    %c0_1 = arith.constant 0 : index
    %3 = vector.load %arg2[%c0, %c0_1] : memref<16x128xf32, #tpu.memory_space<vmem>>, vector<16x128xf32>
    %c0_2 = arith.constant 0 : index
    %c0_3 = arith.constant 0 : index
    %4 = vector.load %arg3[%c0_2, %c0_3] : memref<16x128xf32, #tpu.memory_space<vmem>>, vector<16x128xf32>
    %cst = arith.constant 9.99999997E-7 : f32
    %5 = vector.broadcast %cst : f32 to vector<16x128xf32>
    %6 = arith.cmpf ole, %4, %5 : vector<16x128xf32>
    %7 = math.absf %3 : vector<16x128xf32>
    %cst_4 = arith.constant 0.000000e+00 : f32
    %8 = vector.broadcast %cst_4 : f32 to vector<16x128xf32>
    %9 = arith.subf %8, %7 : vector<16x128xf32>
    %10 = math.exp %9 : vector<16x128xf32>
    %cst_5 = arith.constant 0.000000e+00 : f32
    %11 = vector.broadcast %cst_5 : f32 to vector<16x128xf32>
    %12 = arith.maximumf %3, %11 : vector<16x128xf32>
    %13 = math.log1p %10 : vector<16x128xf32>
    %14 = arith.addf %12, %13 : vector<16x128xf32>
    %15 = arith.subf %14, %3 : vector<16x128xf32>
    %cst_6 = arith.constant 1.000000e+00 : f32
    %16 = vector.broadcast %cst_6 : f32 to vector<16x128xf32>
    %17 = arith.addf %16, %10 : vector<16x128xf32>
    %18 = tpu.reciprocal %17 {approx = true} : vector<16x128xf32> -> vector<16x128xf32>
    %cst_7 = arith.constant 0.000000e+00 : f32
    %19 = vector.broadcast %cst_7 : f32 to vector<16x128xf32>
    %20 = arith.cmpf oge, %3, %19 : vector<16x128xf32>
    %cst_8 = arith.constant 1.000000e+00 : f32
    %21 = vector.broadcast %cst_8 : f32 to vector<16x128xf32>
    %22 = arith.select %20, %21, %10 : vector<16x128xi1>, vector<16x128xf32>
    %23 = arith.mulf %22, %18 : vector<16x128xf32>
    %24 = arith.mulf %23, %23 : vector<16x128xf32>
    %cst_9 = arith.constant 1.000000e+00 : f32
    %25 = vector.broadcast %cst_9 : f32 to vector<16x128xf32>
    %26 = arith.subf %25, %23 : vector<16x128xf32>
    %27 = arith.mulf %26, %26 : vector<16x128xf32>
    %cst_10 = arith.constant 7.500000e-01 : f32
    %28 = vector.broadcast %cst_10 : f32 to vector<16x128xf32>
    %29 = arith.mulf %28, %24 : vector<16x128xf32>
    %30 = arith.mulf %29, %14 : vector<16x128xf32>
    %cst_11 = arith.constant 0.000000e+00 : f32
    %31 = vector.broadcast %cst_11 : f32 to vector<16x128xf32>
    %32 = arith.select %6, %30, %31 : vector<16x128xi1>, vector<16x128xf32>
    %cst_12 = arith.constant 2.500000e-01 : f32
    %33 = vector.broadcast %cst_12 : f32 to vector<16x128xf32>
    %34 = arith.mulf %33, %27 : vector<16x128xf32>
    %35 = arith.mulf %34, %15 : vector<16x128xf32>
    %cst_13 = arith.constant 0.000000e+00 : f32
    %36 = vector.broadcast %cst_13 : f32 to vector<16x128xf32>
    %37 = arith.select %6, %36, %35 : vector<16x128xi1>, vector<16x128xf32>
    %c1_i32 = arith.constant 1 : i32
    %38 = arith.muli %arg0, %c1_i32 : i32
    %39 = arith.addi %38, %arg1 : i32
    %c1_i32_14 = arith.constant 1 : i32
    %40 = arith.addi %39, %c1_i32_14 : i32
    %c16_i32 = arith.constant 16 : i32
    %41 = arith.muli %40, %c16_i32 : i32
    %c16_i32_15 = arith.constant 16 : i32
    %42 = arith.cmpi sle, %41, %c16_i32_15 : i32
    %43 = arith.extui %42 : i1 to i32
    %c0_i32_16 = arith.constant 0 : i32
    %44 = arith.cmpi ne, %43, %c0_i32_16 : i32
    scf.if %44 {
      %c0_18 = arith.constant 0 : index
      %c0_19 = arith.constant 0 : index
      %c0_20 = arith.constant 0 : index
      %48 = vector.load %arg4[%c0_18, %c0_19, %c0_20] : memref<1x8x128xf32, #tpu.memory_space<vmem>>, vector<1x8x128xf32>
      %49 = vector.shape_cast %32 : vector<16x128xf32> to vector<2x8x128xf32>
      %cst_21 = arith.constant dense<0.000000e+00> : vector<8x128xf32>
      %50 = vector.multi_reduction <add>, %49, %cst_21 [0] : vector<2x8x128xf32> to vector<8x128xf32>
      %51 = vector.shape_cast %50 : vector<8x128xf32> to vector<1x8x128xf32>
      %52 = arith.addf %48, %51 : vector<1x8x128xf32>
      %c0_22 = arith.constant 0 : index
      %c0_23 = arith.constant 0 : index
      %c0_24 = arith.constant 0 : index
      %53 = vector.load %arg4[%c0_22, %c0_23, %c0_24] : memref<1x8x128xf32, #tpu.memory_space<vmem>>, vector<1x8x128xf32>
      tpu.vector_store %arg4[%c0_22, %c0_23, %c0_24], %52 {strides = array<i32>} : memref<1x8x128xf32, #tpu.memory_space<vmem>>, vector<1x8x128xf32>,
      %c0_25 = arith.constant 0 : index
      %c0_26 = arith.constant 0 : index
      %c0_27 = arith.constant 0 : index
      %54 = vector.load %arg5[%c0_25, %c0_26, %c0_27] : memref<1x8x128xf32, #tpu.memory_space<vmem>>, vector<1x8x128xf32>
      %55 = vector.shape_cast %37 : vector<16x128xf32> to vector<2x8x128xf32>
      %cst_28 = arith.constant dense<0.000000e+00> : vector<8x128xf32>
      %56 = vector.multi_reduction <add>, %55, %cst_28 [0] : vector<2x8x128xf32> to vector<8x128xf32>
      %57 = vector.shape_cast %56 : vector<8x128xf32> to vector<1x8x128xf32>
      %58 = arith.addf %54, %57 : vector<1x8x128xf32>
      %c0_29 = arith.constant 0 : index
      %c0_30 = arith.constant 0 : index
      %c0_31 = arith.constant 0 : index
      %59 = vector.load %arg5[%c0_29, %c0_30, %c0_31] : memref<1x8x128xf32, #tpu.memory_space<vmem>>, vector<1x8x128xf32>
      tpu.vector_store %arg5[%c0_29, %c0_30, %c0_31], %58 {strides = array<i32>} : memref<1x8x128xf32, #tpu.memory_space<vmem>>, vector<1x8x128xf32>,
    } else {
    }
    %true = arith.constant true
    %45 = arith.xori %42, %true : i1
    %46 = arith.extui %45 : i1 to i32
    %c0_i32_17 = arith.constant 0 : i32
    %47 = arith.cmpi ne, %46, %c0_i32_17 : i32
    scf.if %47 {
      %c16_i32_18 = arith.constant 16 : i32
      %48 = arith.muli %39, %c16_i32_18 : i32
      %c16_i32_19 = arith.constant 16 : i32
      %49 = arith.subi %c16_i32_19, %48 : i32
      %50 = tpu.iota {dimensions = array<i32: 0>} : vector<16x128xi32>
      %51 = vector.broadcast %49 : i32 to vector<16x128xi32>
      %52 = arith.cmpi slt, %50, %51 : vector<16x128xi32>
      %cst_20 = arith.constant 0.000000e+00 : f32
      %53 = vector.broadcast %cst_20 : f32 to vector<16x128xf32>
      %54 = arith.select %52, %32, %53 : vector<16x128xi1>, vector<16x128xf32>
      %cst_21 = arith.constant 0.000000e+00 : f32
      %55 = vector.broadcast %cst_21 : f32 to vector<16x128xf32>
      %56 = arith.select %52, %37, %55 : vector<16x128xi1>, vector<16x128xf32>
      %c0_22 = arith.constant 0 : index
      %c0_23 = arith.constant 0 : index
      %c0_24 = arith.constant 0 : index
      %57 = vector.load %arg4[%c0_22, %c0_23, %c0_24] : memref<1x8x128xf32, #tpu.memory_space<vmem>>, vector<1x8x128xf32>
      %58 = vector.shape_cast %54 : vector<16x128xf32> to vector<2x8x128xf32>
      %cst_25 = arith.constant dense<0.000000e+00> : vector<8x128xf32>
      %59 = vector.multi_reduction <add>, %58, %cst_25 [0] : vector<2x8x128xf32> to vector<8x128xf32>
      %60 = vector.shape_cast %59 : vector<8x128xf32> to vector<1x8x128xf32>
      %61 = arith.addf %57, %60 : vector<1x8x128xf32>
      %c0_26 = arith.constant 0 : index
      %c0_27 = arith.constant 0 : index
      %c0_28 = arith.constant 0 : index
      %62 = vector.load %arg4[%c0_26, %c0_27, %c0_28] : memref<1x8x128xf32, #tpu.memory_space<vmem>>, vector<1x8x128xf32>
      tpu.vector_store %arg4[%c0_26, %c0_27, %c0_28], %61 {strides = array<i32>} : memref<1x8x128xf32, #tpu.memory_space<vmem>>, vector<1x8x128xf32>,
      %c0_29 = arith.constant 0 : index
      %c0_30 = arith.constant 0 : index
      %c0_31 = arith.constant 0 : index
      %63 = vector.load %arg5[%c0_29, %c0_30, %c0_31] : memref<1x8x128xf32, #tpu.memory_space<vmem>>, vector<1x8x128xf32>
      %64 = vector.shape_cast %56 : vector<16x128xf32> to vector<2x8x128xf32>
      %cst_32 = arith.constant dense<0.000000e+00> : vector<8x128xf32>
      %65 = vector.multi_reduction <add>, %64, %cst_32 [0] : vector<2x8x128xf32> to vector<8x128xf32>
      %66 = vector.shape_cast %65 : vector<8x128xf32> to vector<1x8x128xf32>
      %67 = arith.addf %63, %66 : vector<1x8x128xf32>
      %c0_33 = arith.constant 0 : index
      %c0_34 = arith.constant 0 : index
      %c0_35 = arith.constant 0 : index
      %68 = vector.load %arg5[%c0_33, %c0_34, %c0_35] : memref<1x8x128xf32, #tpu.memory_space<vmem>>, vector<1x8x128xf32>
      tpu.vector_store %arg5[%c0_33, %c0_34, %c0_35], %67 {strides = array<i32>} : memref<1x8x128xf32, #tpu.memory_space<vmem>>, vector<1x8x128xf32>,
    } else {
    }
    return
  }
  func.func @transform_0(%arg0: i32, %arg1: i32) -> (i32, i32) {
    %c1_i32 = arith.constant 1 : i32
    %0 = arith.muli %arg0, %c1_i32 : i32
    %1 = arith.addi %0, %arg1 : i32
    %c0_i32 = arith.constant 0 : i32
    %2 = arith.minsi %1, %c0_i32 : i32
    %c0_i32_0 = arith.constant 0 : i32
    %c0_i32_1 = arith.constant 0 : i32
    return %2, %c0_i32_0 : i32, i32
  }
  func.func @transform_1(%arg0: i32, %arg1: i32) -> (i32, i32) {
    %c1_i32 = arith.constant 1 : i32
    %0 = arith.muli %arg0, %c1_i32 : i32
    %1 = arith.addi %0, %arg1 : i32
    %c0_i32 = arith.constant 0 : i32
    %2 = arith.minsi %1, %c0_i32 : i32
    %c0_i32_0 = arith.constant 0 : i32
    %c0_i32_1 = arith.constant 0 : i32
    return %2, %c0_i32_0 : i32, i32
  }
  func.func @transform_2(%arg0: i32, %arg1: i32) -> (i32, i32, i32) {
    %c0_i32 = arith.constant 0 : i32
    %c0_i32_0 = arith.constant 0 : i32
    %c0_i32_1 = arith.constant 0 : i32
    return %arg0, %c0_i32, %c0_i32_0 : i32, i32, i32
  }
  func.func @transform_3(%arg0: i32, %arg1: i32) -> (i32, i32, i32) {
    %c0_i32 = arith.constant 0 : i32
    %c0_i32_0 = arith.constant 0 : i32
    %c0_i32_1 = arith.constant 0 : i32
    return %arg0, %c0_i32, %c0_i32_0 : i32, i32, i32
  }
}

</mosaic_0001>

<llo_original>
// kernel: tpu_custom_call.1
$region0: #{tpu_custom_call.1}
  #allocation0 [shape = 'u32[]', space=smem, size = 0x4, offset = 0x4, fixed_abs, tag = 'smem constant byte address 0x4 - core index']
  #allocation1 [shape = 'u32[144,128]{1,0:T(1,128)}', space=vmem, size = 0x12000, scoped, tag = 'internal scratch']
  %s0 = inlined_call_operand.hbm [shape: f32[16,128], index: 0, kind: input, shape index: {}]
  %s1 = inlined_call_operand.hbm [shape: f32[16,128], index: 1, kind: input, shape index: {}]
  %s2 = inlined_call_operand.hbm [shape: f32[1,8,128], index: 2, kind: output, shape index: {0}]
  %s3 = inlined_call_operand.hbm [shape: f32[1,8,128], index: 3, kind: output, shape index: {1}]
  %4 = xla_tuple %s2, %s3
  %s5 = sld [smem:[#allocation0]]
  $region46: #{tpu_custom_call.1} parent=0
    _
  %s7 = ssub.s32 1, %s5
  %s8 = scalar_select 0, %s7, %s5
  $region1: #{tpu_custom_call.1} parent=0
    #allocation2 [shape = 'u8[8192]{0}', space=vmem, size = 0x2000, scoped, tag = 'input window, operand 0, single buffered']
    #allocation3 [shape = 's32[1]{0}', space=sflag, size = 0x4, scoped, tag = 'scoped memory for tpu_custom_call.1']
    #allocation4 [shape = 's32[1]{0}', space=sflag, size = 0x4, scoped, tag = 'scoped memory for tpu_custom_call.1']
    #allocation5 [shape = 'u8[8192]{0}', space=vmem, size = 0x2000, scoped, tag = 'input window, operand 1, single buffered']
    #allocation6 [shape = 's32[1]{0}', space=sflag, size = 0x4, scoped, tag = 'scoped memory for tpu_custom_call.1']
    #allocation7 [shape = 'u8[4096]{0}', space=vmem, size = 0x1000, scoped, tag = 'output window, operand 0, single buffered']
    #allocation8 [shape = 'u8[4096]{0}', space=vmem, size = 0x1000, scoped, tag = 'output window, operand 1, single buffered']
    #allocation9 [shape = 's32[1]{0}', space=sflag, size = 0x4, scoped, tag = 'scoped memory for tpu_custom_call.1']
    %9 = vsyncpa [#allocation3], 0
    %10 = vsyncpa [#allocation6], 0
    %11 = vsyncpa [#allocation4], 0
    %12 = vsyncpa [#allocation9], 0
    // Predicated region
    $region2: #{tpu_custom_call.1} parent=1 // pred_check
      _
    $region3: #{tpu_custom_call.1} parent=1 // pred_check_branch
      %14 = sbr.rel (0) target = $region5
    $region4: #{tpu_custom_call.1} parent=1 // pred_region
      %s15 = sadd.s32 0, 0
      %p16 = scmp.lt.s32.totalorder %s15, 0
      %s17 = scalar_select %p16, %s15, 0
      %s18 = smul.u32 2, %s17
      %s20 = ssub.s32 256, 256
      %21 = vsyncadd [#allocation3], %s20
      %s22 = smul.addr %s18, 128
      %s23 = scalar_lea.hbm %s0, %s22
      %s24 = sshll.u32 [#allocation2], 4
      %s25 = int_to_ptr.vmem [resolvable:$true] %s24
      %30 = dma.hbm_to_vmem [thread:$0]  %s23, 256, %s25, [#allocation3], 128, 128, 8
    $region5: #{tpu_custom_call.1} parent=1 // pred_fallthru
      _
    // Predicated region
    $region6: #{tpu_custom_call.1} parent=1 // pred_check
      _
    $region7: #{tpu_custom_call.1} parent=1 // pred_check_branch
      %32 = sbr.rel (0) target = $region9
    $region8: #{tpu_custom_call.1} parent=1 // pred_region
      %s33 = sadd.s32 0, 0
      %p34 = scmp.lt.s32.totalorder %s33, 0
      %s35 = scalar_select %p34, %s33, 0
      %s36 = smul.u32 2, %s35
      %s38 = ssub.s32 256, 256
      %39 = vsyncadd [#allocation6], %s38
      %s40 = smul.addr %s36, 128
      %s41 = scalar_lea.hbm %s1, %s40
      %s42 = sshll.u32 [#allocation5], 4
      %s43 = int_to_ptr.vmem [resolvable:$true] %s42
      %48 = dma.hbm_to_vmem [thread:$0]  %s41, 256, %s43, [#allocation6], 128, 128, 8
    $region9: #{tpu_custom_call.1} parent=1 // pred_fallthru
      _
    // Predicated region
    $region10: #{tpu_custom_call.1} parent=1 // pred_check
      _
    $region11: #{tpu_custom_call.1} parent=1 // pred_check_branch
      %50 = sbr.rel (0) target = $region13
    $region12: #{tpu_custom_call.1} parent=1 // pred_region
      %51 = dma.done [#allocation3], 256
    $region13: #{tpu_custom_call.1} parent=1 // pred_fallthru
      _
    // Predicated region
    $region14: #{tpu_custom_call.1} parent=1 // pred_check
      _
    $region15: #{tpu_custom_call.1} parent=1 // pred_check_branch
      %53 = sbr.rel (0) target = $region17
    $region16: #{tpu_custom_call.1} parent=1 // pred_region
      %54 = dma.done [#allocation6], 256
    $region17: #{tpu_custom_call.1} parent=1 // pred_fallthru
      _
    %s55 = sadd.s32 0, 0
    %p56 = scmp.lt.s32.totalorder %s55, 0
    %s57 = scalar_select %p56, %s55, 0
    %s58 = smul.u32 2, %s57
    %s59 = sadd.s32 0, 0
    %p60 = scmp.lt.s32.totalorder %s59, 0
    %s61 = scalar_select %p60, %s59, 0
    %s62 = smul.u32 2, %s61
    %p63 = scmp.eq.s32.totalorder 0, 0
    // Predicated region
    $region18: #{tpu_custom_call.1} parent=1 // pred_check
      %p64 = pneg %p63
    $region19: #{tpu_custom_call.1} parent=1 // pred_check_branch
      %66 = sbr.rel (%p64) target = $region21
    $region20: #{tpu_custom_call.1} parent=1 // pred_region
      %67 = vst [vmem:[#allocation7] sm:$0xff] 0.0
      %68 = vst [vmem:[#allocation8] sm:$0xff] 0.0
    $region21: #{tpu_custom_call.1} parent=1 // pred_fallthru
      _
    %v69 = vld [vmem:[#allocation2] sm:$0xff]
    %v70 = vld [vmem:[#allocation2 + $0x8] sm:$0xff]
    %v71 = vld [vmem:[#allocation5] sm:$0xff]
    %v72 = vld [vmem:[#allocation5 + $0x8] sm:$0xff]
    %vm73 = vcmp.le.f32.partialorder %v71, 1e-06
    %vm74 = vcmp.le.f32.partialorder %v72, 1e-06
    %v75 = vand.u32 2147483647, %v69
    %v76 = vand.u32 2147483647, %v70
    %v77 = vsub.f32 0.0, %v75
    %v78 = vsub.f32 0.0, %v76
    %v79 = vmul.f32 %v77, 1.442695
    %v80 = vpow.pop %v79
    %v81 = vmul.f32 %v78, 1.442695
    %v82 = vpow.pop %v81
    %v83 = vmax.f32 %v69, 0.0
    %v84 = vmax.f32 %v70, 0.0
    %v85 = vadd.f32 %v80, 1.0
    %v86 = vlog2.pop %v85
    %v87 = vmul.f32 %v86, 0.6931472
    %v88 = vmul.f32 -0.5, %v80
    %v89 = vadd.f32 %v88, 1.0
    %v90 = vmul.f32 %v89, %v80
    %v91 = vand.u32 2147483647, %v80
    %vm92 = vcmp.lt.f32.partialorder %v91, 0.0004427343
    %v93 = vsel %vm92, %v90, %v87
    %v94 = vadd.f32 %v82, 1.0
    %v95 = vlog2.pop %v94
    %v96 = vmul.f32 %v95, 0.6931472
    %v97 = vmul.f32 -0.5, %v82
    %v98 = vadd.f32 %v97, 1.0
    %v99 = vmul.f32 %v98, %v82
    %v100 = vand.u32 2147483647, %v82
    %vm101 = vcmp.lt.f32.partialorder %v100, 0.0004427343
    %v102 = vsel %vm101, %v99, %v96
    %v103 = vadd.f32 %v83, %v93
    %v104 = vadd.f32 %v84, %v102
    %v105 = vsub.f32 %v103, %v69
    %v106 = vsub.f32 %v104, %v70
    %v107 = vadd.f32 %v80, 1.0
    %v108 = vadd.f32 %v82, 1.0
    %v109 = vrcp.pop %v107
    %v110 = vrcp.pop %v108
    %vm111 = vcmp.ge.f32.partialorder %v69, 0.0
    %vm112 = vcmp.ge.f32.partialorder %v70, 0.0
    %v113 = vsel %vm111, 1.0, %v80
    %v114 = vsel %vm112, 1.0, %v82
    %v115 = vmul.f32 %v113, %v109
    %v116 = vmul.f32 %v114, %v110
    %v117 = vmul.f32 %v115, %v115
    %v118 = vmul.f32 %v116, %v116
    %v119 = vsub.f32 1.0, %v115
    %v120 = vsub.f32 1.0, %v116
    %v121 = vmul.f32 %v119, %v119
    %v122 = vmul.f32 %v120, %v120
    %v123 = vmul.f32 %v117, 0.75
    %v124 = vmul.f32 %v118, 0.75
    %v125 = vmul.f32 %v123, %v103
    %v126 = vmul.f32 %v124, %v104
    %v127 = vsel %vm73, %v125, 0.0
    %v128 = vsel %vm74, %v126, 0.0
    %v129 = vmul.f32 %v121, 0.25
    %v130 = vmul.f32 %v122, 0.25
    %v131 = vmul.f32 %v129, %v105
    %v132 = vmul.f32 %v130, %v106
    %v133 = vsel %vm73, 0.0, %v131
    %v134 = vsel %vm74, 0.0, %v132
    %s135 = sadd.s32 0, 0
    %s136 = sadd.s32 %s135, 1
    %s137 = smul.u32 %s136, 16
    %p138 = scmp.le.s32.totalorder %s137, 16
    // Predicated region
    $region22: #{tpu_custom_call.1} parent=1 // pred_check
      %p139 = pneg %p138
    $region23: #{tpu_custom_call.1} parent=1 // pred_check_branch
      %141 = sbr.rel (%p139) target = $region25
    $region24: #{tpu_custom_call.1} parent=1 // pred_region
      %v142 = vld [vmem:[#allocation7] sm:$0xff]
      %v143 = vadd.f32 %v127, %v128
      %v144 = vadd.f32 %v142, %v143
      %145 = vst [vmem:[#allocation7] sm:$0xff] %v144
      %v146 = vld [vmem:[#allocation8] sm:$0xff]
      %v147 = vadd.f32 %v133, %v134
      %v148 = vadd.f32 %v146, %v147
      %149 = vst [vmem:[#allocation8] sm:$0xff] %v148
    $region25: #{tpu_custom_call.1} parent=1 // pred_fallthru
      _
    %p150 = scmp.gt.s32.totalorder %s137, 16
    // Predicated region
    $region26: #{tpu_custom_call.1} parent=1 // pred_check
      %p151 = pneg %p150
    $region27: #{tpu_custom_call.1} parent=1 // pred_check_branch
      %153 = sbr.rel (%p151) target = $region29
    $region28: #{tpu_custom_call.1} parent=1 // pred_region
      %s154 = smul.u32 %s135, 16
      %s155 = ssub.s32 16, %s154
      %v156 = vlaneseq
      %v157 = vshrl.u32 %v156, 7
      %v158 = vadd.s32 %v157, 8
      %v159 = vstv %s155
      %vm160 = vcmp.lt.s32.totalorder %v157, %v159
      %vm161 = vcmp.lt.s32.totalorder %v158, %v159
      %v162 = vsel %vm160, %v127, 0.0
      %v163 = vsel %vm161, %v128, 0.0
      %v164 = vsel %vm160, %v133, 0.0
      %v165 = vsel %vm161, %v134, 0.0
      %v166 = vld [vmem:[#allocation7] sm:$0xff]
      %v167 = vadd.f32 %v162, %v163
      %v168 = vadd.f32 %v166, %v167
      %169 = vst [vmem:[#allocation7] sm:$0xff] %v168
      %v170 = vld [vmem:[#allocation8] sm:$0xff]
      %v171 = vadd.f32 %v164, %v165
      %v172 = vadd.f32 %v170, %v171
      %173 = vst [vmem:[#allocation8] sm:$0xff] %v172
    $region29: #{tpu_custom_call.1} parent=1 // pred_fallthru
      _
    // Predicated region
    $region30: #{tpu_custom_call.1} parent=1 // pred_check
      _
    $region31: #{tpu_custom_call.1} parent=1 // pred_check_branch
      %175 = sbr.rel (0) target = $region33
    $region32: #{tpu_custom_call.1} parent=1 // pred_region
      %s177 = ssub.s32 128, 128
      %178 = vsyncadd [#allocation4], %s177
      %s180 = sshll.u32 [#allocation7], 4
      %s181 = int_to_ptr.vmem [resolvable:$true] %s180
      %183 = dma.vmem_to_hbm [thread:$0]  %s181, 128, %s2, [#allocation4]
    $region33: #{tpu_custom_call.1} parent=1 // pred_fallthru
      _
    // Predicated region
    $region34: #{tpu_custom_call.1} parent=1 // pred_check
      _
    $region35: #{tpu_custom_call.1} parent=1 // pred_check_branch
      %185 = sbr.rel (0) target = $region37
    $region36: #{tpu_custom_call.1} parent=1 // pred_region
      %s187 = ssub.s32 128, 128
      %188 = vsyncadd [#allocation9], %s187
      %s190 = sshll.u32 [#allocation8], 4
      %s191 = int_to_ptr.vmem [resolvable:$true] %s190
      %193 = dma.vmem_to_hbm [thread:$0]  %s191, 128, %s3, [#allocation9]
    $region37: #{tpu_custom_call.1} parent=1 // pred_fallthru
      _
    // Predicated region
    $region38: #{tpu_custom_call.1} parent=1 // pred_check
      _
    $region39: #{tpu_custom_call.1} parent=1 // pred_check_branch
      %195 = sbr.rel (0) target = $region41
    $region40: #{tpu_custom_call.1} parent=1 // pred_region
      %196 = dma.done [#allocation4], 128
    $region41: #{tpu_custom_call.1} parent=1 // pred_fallthru
      _
    // Predicated region
    $region42: #{tpu_custom_call.1} parent=1 // pred_check
      _
    $region43: #{tpu_custom_call.1} parent=1 // pred_check_branch
      %198 = sbr.rel (0) target = $region45
    $region44: #{tpu_custom_call.1} parent=1 // pred_region
      %199 = dma.done [#allocation9], 128
    $region45: #{tpu_custom_call.1} parent=1 // pred_fallthru
      _
    %200 = vsyncpa [#allocation3], 1
    %201 = vsyncpa [#allocation6], 1
    %202 = vsyncpa [#allocation4], 1
    %203 = vsyncpa [#allocation9], 1

</llo_original>
